<compile_context>
chip_gen: v7x
topology: tpu7x:2x2x1
jax: 0.10.0
libtpu: 0.0.40
codegen_flags: <defaults>
</compile_context>

<pallas_src>
import functools
import math

import jax
import jax.numpy as jnp
from jax import lax
from jax.experimental import pallas as pl
from jax.experimental.pallas import tpu as pltpu

SCALE = 1.0 / math.sqrt(512.0)            # hard-coded in the PyTorch module
P_DROP = 0.1
KEEP_SCALE = 1.0 / (1.0 - P_DROP)
DROP_THRESH = int(round(P_DROP * (2 ** 32)))   # drop when hash_u32 < thresh


def _fmix32(x):
    """murmur3 finalizer — cheap elementwise integer mixing (VPU only)."""
    x = x ^ (x >> 16)
    x = x * jnp.uint32(0x85EBCA6B)
    x = x ^ (x >> 13)
    x = x * jnp.uint32(0xC2B2AE35)
    x = x ^ (x >> 16)
    return x


def _attn_kernel(seed_ref, x1_ref, x2_ref, o_ref, m_sc, l_sc, acc_sc,
                 *, tm, tn, m_total, n_total):
    b = pl.program_id(0)
    mi = pl.program_id(1)
    ni = pl.program_id(2)

    @pl.when(ni == 0)
    def _init():
        m_sc[...] = jnp.full(m_sc.shape, -jnp.inf, dtype=jnp.float32)
        l_sc[...] = jnp.zeros(l_sc.shape, dtype=jnp.float32)
        acc_sc[...] = jnp.zeros(acc_sc.shape, dtype=jnp.float32)

    # Fold the 1/sqrt(512) scale into Q (TM*D muls instead of TM*TN).
    q = x1_ref[0].astype(jnp.float32) * SCALE          # (TM, D)
    k = x2_ref[0]                                       # (TN, D)

    # Scores: contract last dims directly — MXU consumes transposed-RHS form,
    # no explicit K transpose / copy.
    s = lax.dot_general(q, k.astype(jnp.float32),
                        (((1,), (1,)), ((), ())),
                        preferred_element_type=jnp.float32)      # (TM, TN)

    # Online softmax update.
    m_prev = m_sc[...]
    m_new = jnp.maximum(m_prev, jnp.max(s, axis=-1, keepdims=True))
    alpha = jnp.exp(m_prev - m_new)
    e = jnp.exp(s - m_new)
    l_sc[...] = alpha * l_sc[...] + jnp.sum(e, axis=-1, keepdims=True)
    m_sc[...] = m_new

    # Dropout mask: hash of (seed, b, global row, global col) — independent of
    # the tiling, portable (no pltpu.prng_* needed).
    rows = (mi * tm).astype(jnp.uint32) + lax.broadcasted_iota(
        jnp.uint32, (tm, tn), 0)
    cols = (ni * tn).astype(jnp.uint32) + lax.broadcasted_iota(
        jnp.uint32, (tm, tn), 1)
    lin = (b.astype(jnp.uint32) * jnp.uint32(m_total) + rows) \
          * jnp.uint32(n_total) + cols
    key = _fmix32(seed_ref[0].astype(jnp.uint32) + jnp.uint32(0x9E3779B9))
    bits = _fmix32(lin ^ key)
    keep = bits >= jnp.uint32(DROP_THRESH)

    # Apply the mask to the unnormalized exp tile; normalization and the
    # 1/(1-p) dropout scale are applied once per row at the end.
    e_kept = jnp.where(keep, e, 0.0).astype(k.dtype)

    acc_sc[...] = alpha * acc_sc[...] + jnp.dot(
        e_kept, k, preferred_element_type=jnp.float32)

    @pl.when(ni == pl.num_programs(2) - 1)
    def _finalize():
        scale = KEEP_SCALE / l_sc[...]                  # (TM, 1), per-row
        o_ref[0] = (acc_sc[...] * scale).astype(o_ref.dtype)


def _pick_tile(dim, candidates):
    for c in candidates:
        if dim % c == 0:
            return c
    return dim


@jax.jit
def attention_dropout(x1, x2, seed):
    B, M, D = x1.shape
    Bk, N, Dk = x2.shape
    assert B == Bk and D == Dk, "x1 (B,M,D) and x2 (B,N,D) must share B and D"

    # Tiles sized to stay well under the 32 MiB default scoped VMEM on
    # v6e/v7x (and v7x's 64 MiB physical) while keeping MXU-friendly shapes.
    tm = _pick_tile(M, (256, 128))
    tn = _pick_tile(N, (512, 256, 128))

    kernel = functools.partial(_attn_kernel, tm=tm, tn=tn,
                               m_total=M, n_total=N)

    grid_spec = pltpu.PrefetchScalarGridSpec(
        num_scalar_prefetch=1,
        grid=(B, M // tm, N // tn),
        in_specs=[
            pl.BlockSpec((1, tm, D), lambda b, mi, ni, seed: (b, mi, 0)),
            pl.BlockSpec((1, tn, D), lambda b, mi, ni, seed: (b, ni, 0)),
        ],
        out_specs=pl.BlockSpec((1, tm, D), lambda b, mi, ni, seed: (b, mi, 0)),
        scratch_shapes=[
            pltpu.VMEM((tm, 1), jnp.float32),   # running row max
            pltpu.VMEM((tm, 1), jnp.float32),   # running denominator
            pltpu.VMEM((tm, D), jnp.float32),   # output accumulator
        ],
    )

    return pl.pallas_call(
        kernel,
        out_shape=jax.ShapeDtypeStruct((B, M, D), x1.dtype),
        grid_spec=grid_spec,
        compiler_params=pltpu.CompilerParams(
            dimension_semantics=("parallel", "parallel", "arbitrary"),
        ),
    )(seed, x1, x2)


if __name__ == "__main__":
    # Small shapes consistent with the module's (B, M, D) x (B, N, D) contract.
    B, M, N, D = 2, 16, 16, 32
    key = jax.random.PRNGKey(0)
    k1, k2 = jax.random.split(key)
    x1 = jax.random.normal(k1, (B, M, D), dtype=jnp.float32)
    x2 = jax.random.normal(k2, (B, N, D), dtype=jnp.float32)
    seed = jnp.array([1234], dtype=jnp.int32)

    out = attention_dropout(x1, x2, seed)
    jax.block_until_ready(out)

    assert out.shape == (B, M, D)
    assert out.dtype == jnp.float32
    assert bool(jnp.all(jnp.isfinite(out)))
    print("KERNEL_OK")
</pallas_src>

<mosaic_0001>
module attributes {stable_mosaic.version = 11 : i64} {
  func.func @_attn_kernel(%arg0: i32, %arg1: i32, %arg2: i32, %arg3: memref<1xi32, #tpu.memory_space<smem>>, %arg4: memref<1x16x32xf32, #tpu.memory_space<vmem>>, %arg5: memref<1x16x32xf32, #tpu.memory_space<vmem>>, %arg6: memref<1x16x32xf32, #tpu.memory_space<vmem>>, %arg7: memref<16x1xf32, #tpu.memory_space<vmem>>, %arg8: memref<16x1xf32, #tpu.memory_space<vmem>>, %arg9: memref<16x32xf32, #tpu.memory_space<vmem>>) attributes {dimension_semantics = [#tpu.dimension_semantics<parallel>, #tpu.dimension_semantics<parallel>, #tpu.dimension_semantics<arbitrary>], iteration_bounds = array<i64: 2, 1, 1>, scalar_prefetch = 1 : i64, scratch_operands = 3 : i64, tpu.core_type = #tpu.core_type<tc>, window_params = [{transform_indices = @transform_0, window_bounds = array<i64: 1, 16, 32>}, {transform_indices = @transform_1, window_bounds = array<i64: 1, 16, 32>}, {transform_indices = @transform_2, window_bounds = array<i64: 1, 16, 32>}]} {
    %c0_i32 = arith.constant 0 : i32
    %0 = arith.cmpi eq, %arg2, %c0_i32 : i32
    %1 = arith.extui %0 : i1 to i32
    %c0_i32_0 = arith.constant 0 : i32
    %2 = arith.cmpi ne, %1, %c0_i32_0 : i32
    scf.if %2 {
      %cst_36 = arith.constant 0xFF800000 : f32
      %78 = vector.broadcast %cst_36 : f32 to vector<16x1xf32>
      %c0_37 = arith.constant 0 : index
      %c0_38 = arith.constant 0 : index
      %79 = vector.load %arg7[%c0_37, %c0_38] : memref<16x1xf32, #tpu.memory_space<vmem>>, vector<16x1xf32>
      tpu.vector_store %arg7[%c0_37, %c0_38], %78 {strides = array<i32>} : memref<16x1xf32, #tpu.memory_space<vmem>>, vector<16x1xf32>,
      %cst_39 = arith.constant 0.000000e+00 : f32
      %80 = vector.broadcast %cst_39 : f32 to vector<16x1xf32>
      %c0_40 = arith.constant 0 : index
      %c0_41 = arith.constant 0 : index
      %81 = vector.load %arg8[%c0_40, %c0_41] : memref<16x1xf32, #tpu.memory_space<vmem>>, vector<16x1xf32>
      tpu.vector_store %arg8[%c0_40, %c0_41], %80 {strides = array<i32>} : memref<16x1xf32, #tpu.memory_space<vmem>>, vector<16x1xf32>,
      %cst_42 = arith.constant 0.000000e+00 : f32
      %82 = vector.broadcast %cst_42 : f32 to vector<16x32xf32>
      %c0_43 = arith.constant 0 : index
      %c0_44 = arith.constant 0 : index
      %83 = vector.load %arg9[%c0_43, %c0_44] : memref<16x32xf32, #tpu.memory_space<vmem>>, vector<16x32xf32>
      tpu.vector_store %arg9[%c0_43, %c0_44], %82 {strides = array<i32>} : memref<16x32xf32, #tpu.memory_space<vmem>>, vector<16x32xf32>,
    } else {
    }
    %c0 = arith.constant 0 : index
    %c0_1 = arith.constant 0 : index
    %c0_2 = arith.constant 0 : index
    %3 = vector.load %arg4[%c0, %c0_1, %c0_2] : memref<1x16x32xf32, #tpu.memory_space<vmem>>, vector<1x16x32xf32>
    %4 = vector.shape_cast %3 : vector<1x16x32xf32> to vector<16x32xf32>
    %cst = arith.constant 0.0441941731 : f32
    %5 = vector.broadcast %cst : f32 to vector<16x32xf32>
    %6 = arith.mulf %4, %5 : vector<16x32xf32>
    %c0_3 = arith.constant 0 : index
    %c0_4 = arith.constant 0 : index
    %c0_5 = arith.constant 0 : index
    %7 = vector.load %arg5[%c0_3, %c0_4, %c0_5] : memref<1x16x32xf32, #tpu.memory_space<vmem>>, vector<1x16x32xf32>
    %8 = vector.shape_cast %7 : vector<1x16x32xf32> to vector<16x32xf32>
    %cst_6 = arith.constant dense<0.000000e+00> : vector<16x16xf32>
    %9 = tpu.matmul %6, %8, %cst_6 {dimension_numbers = #tpu.dot_dimension_numbers<[1], [1], [0], [0], [0, 0, 1, 0], [], []>} : vector<16x32xf32>, vector<16x32xf32>, vector<16x16xf32> -> vector<16x16xf32>
    %c0_7 = arith.constant 0 : index
    %c0_8 = arith.constant 0 : index
    %10 = vector.load %arg7[%c0_7, %c0_8] : memref<16x1xf32, #tpu.memory_space<vmem>>, vector<16x1xf32>
    %cst_9 = arith.constant dense<0xFF800000> : vector<16xf32>
    %11 = vector.multi_reduction <maximumf>, %9, %cst_9 [1] : vector<16x16xf32> to vector<16xf32>
    %12 = vector.shape_cast %11 : vector<16xf32> to vector<16x1xf32>
    %13 = arith.maximumf %10, %12 : vector<16x1xf32>
    %14 = arith.subf %10, %13 : vector<16x1xf32>
    %15 = math.exp %14 : vector<16x1xf32>
    %16 = vector.broadcast %13 : vector<16x1xf32> to vector<16x16xf32>
    %17 = arith.subf %9, %16 : vector<16x16xf32>
    %18 = math.exp %17 : vector<16x16xf32>
    %c0_10 = arith.constant 0 : index
    %c0_11 = arith.constant 0 : index
    %19 = vector.load %arg8[%c0_10, %c0_11] : memref<16x1xf32, #tpu.memory_space<vmem>>, vector<16x1xf32>
    %20 = arith.mulf %15, %19 : vector<16x1xf32>
    %cst_12 = arith.constant dense<0.000000e+00> : vector<16xf32>
    %21 = vector.multi_reduction <add>, %18, %cst_12 [1] : vector<16x16xf32> to vector<16xf32>
    %22 = vector.shape_cast %21 : vector<16xf32> to vector<16x1xf32>
    %23 = arith.addf %20, %22 : vector<16x1xf32>
    %c0_13 = arith.constant 0 : index
    %c0_14 = arith.constant 0 : index
    %24 = vector.load %arg8[%c0_13, %c0_14] : memref<16x1xf32, #tpu.memory_space<vmem>>, vector<16x1xf32>
    tpu.vector_store %arg8[%c0_13, %c0_14], %23 {strides = array<i32>} : memref<16x1xf32, #tpu.memory_space<vmem>>, vector<16x1xf32>,
    %c0_15 = arith.constant 0 : index
    %c0_16 = arith.constant 0 : index
    %25 = vector.load %arg7[%c0_15, %c0_16] : memref<16x1xf32, #tpu.memory_space<vmem>>, vector<16x1xf32>
    tpu.vector_store %arg7[%c0_15, %c0_16], %13 {strides = array<i32>} : memref<16x1xf32, #tpu.memory_space<vmem>>, vector<16x1xf32>,
    %c16_i32 = arith.constant 16 : i32
    %26 = arith.muli %arg1, %c16_i32 : i32
    %27 = tpu.iota {dimensions = array<i32: 0>} : vector<16x16xi32>
    %28 = vector.broadcast %26 : i32 to vector<16x16xi32>
    %29 = arith.addi %28, %27 : vector<16x16xi32>
    %c16_i32_17 = arith.constant 16 : i32
    %30 = arith.muli %arg2, %c16_i32_17 : i32
    %31 = tpu.iota {dimensions = array<i32: 1>} : vector<16x16xi32>
    %32 = vector.broadcast %30 : i32 to vector<16x16xi32>
    %33 = arith.addi %32, %31 : vector<16x16xi32>
    %c16_i32_18 = arith.constant 16 : i32
    %34 = arith.muli %arg0, %c16_i32_18 : i32
    %35 = vector.broadcast %34 : i32 to vector<16x16xi32>
    %36 = arith.addi %35, %29 : vector<16x16xi32>
    %c16_i32_19 = arith.constant 16 : i32
    %37 = vector.broadcast %c16_i32_19 : i32 to vector<16x16xi32>
    %38 = arith.muli %36, %37 : vector<16x16xi32>
    %39 = arith.addi %38, %33 : vector<16x16xi32>
    %c0_20 = arith.constant 0 : index
    %40 = memref.load %arg3[%c0_20] : memref<1xi32, #tpu.memory_space<smem>>
    %c-1640531527_i32 = arith.constant -1640531527 : i32
    %41 = arith.addi %40, %c-1640531527_i32 : i32
    %c16_i32_21 = arith.constant 16 : i32
    %42 = arith.shrui %41, %c16_i32_21 : i32
    %43 = arith.xori %41, %42 : i32
    %c-2048144789_i32 = arith.constant -2048144789 : i32
    %44 = arith.muli %43, %c-2048144789_i32 : i32
    %c13_i32 = arith.constant 13 : i32
    %45 = arith.shrui %44, %c13_i32 : i32
    %46 = arith.xori %44, %45 : i32
    %c-1028477387_i32 = arith.constant -1028477387 : i32
    %47 = arith.muli %46, %c-1028477387_i32 : i32
    %c16_i32_22 = arith.constant 16 : i32
    %48 = arith.shrui %47, %c16_i32_22 : i32
    %49 = arith.xori %47, %48 : i32
    %50 = vector.broadcast %49 : i32 to vector<16x16xi32>
    %51 = arith.xori %39, %50 : vector<16x16xi32>
    %c16_i32_23 = arith.constant 16 : i32
    %52 = vector.broadcast %c16_i32_23 : i32 to vector<16x16xi32>
    %53 = arith.shrui %51, %52 : vector<16x16xi32>
    %54 = arith.xori %51, %53 : vector<16x16xi32>
    %c-2048144789_i32_24 = arith.constant -2048144789 : i32
    %55 = vector.broadcast %c-2048144789_i32_24 : i32 to vector<16x16xi32>
    %56 = arith.muli %54, %55 : vector<16x16xi32>
    %c13_i32_25 = arith.constant 13 : i32
    %57 = vector.broadcast %c13_i32_25 : i32 to vector<16x16xi32>
    %58 = arith.shrui %56, %57 : vector<16x16xi32>
    %59 = arith.xori %56, %58 : vector<16x16xi32>
    %c-1028477387_i32_26 = arith.constant -1028477387 : i32
    %60 = vector.broadcast %c-1028477387_i32_26 : i32 to vector<16x16xi32>
    %61 = arith.muli %59, %60 : vector<16x16xi32>
    %c16_i32_27 = arith.constant 16 : i32
    %62 = vector.broadcast %c16_i32_27 : i32 to vector<16x16xi32>
    %63 = arith.shrui %61, %62 : vector<16x16xi32>
    %64 = arith.xori %61, %63 : vector<16x16xi32>
    %c429496730_i32 = arith.constant 429496730 : i32
    %65 = vector.broadcast %c429496730_i32 : i32 to vector<16x16xi32>
    %66 = arith.cmpi uge, %64, %65 : vector<16x16xi32>
    %cst_28 = arith.constant 0.000000e+00 : f32
    %67 = vector.broadcast %cst_28 : f32 to vector<16x16xf32>
    %68 = arith.select %66, %18, %67 : vector<16x16xi1>, vector<16x16xf32>
    %c0_29 = arith.constant 0 : index
    %c0_30 = arith.constant 0 : index
    %69 = vector.load %arg9[%c0_29, %c0_30] : memref<16x32xf32, #tpu.memory_space<vmem>>, vector<16x32xf32>
    %70 = vector.broadcast %15 : vector<16x1xf32> to vector<16x32xf32>
    %71 = arith.mulf %70, %69 : vector<16x32xf32>
    %cst_31 = arith.constant dense<0.000000e+00> : vector<16x32xf32>
    %72 = tpu.matmul %68, %8, %cst_31 {dimension_numbers = #tpu.dot_dimension_numbers<[1], [0], [0], [1], [0, 0, 1, 1], [], []>} : vector<16x16xf32>, vector<16x32xf32>, vector<16x32xf32> -> vector<16x32xf32>
    %73 = arith.addf %71, %72 : vector<16x32xf32>
    %c0_32 = arith.constant 0 : index
    %c0_33 = arith.constant 0 : index
    %74 = vector.load %arg9[%c0_32, %c0_33] : memref<16x32xf32, #tpu.memory_space<vmem>>, vector<16x32xf32>
    tpu.vector_store %arg9[%c0_32, %c0_33], %73 {strides = array<i32>} : memref<16x32xf32, #tpu.memory_space<vmem>>, vector<16x32xf32>,
    %c0_i32_34 = arith.constant 0 : i32
    %75 = arith.cmpi eq, %arg2, %c0_i32_34 : i32
    %76 = arith.extui %75 : i1 to i32
    %c0_i32_35 = arith.constant 0 : i32
    %77 = arith.cmpi ne, %76, %c0_i32_35 : i32
    scf.if %77 {
      %c0_36 = arith.constant 0 : index
      %c0_37 = arith.constant 0 : index
      %78 = vector.load %arg8[%c0_36, %c0_37] : memref<16x1xf32, #tpu.memory_space<vmem>>, vector<16x1xf32>
      %cst_38 = arith.constant 1.11111116 : f32
      %79 = vector.broadcast %cst_38 : f32 to vector<16x1xf32>
      %80 = arith.divf %79, %78 : vector<16x1xf32>
      %c0_39 = arith.constant 0 : index
      %c0_40 = arith.constant 0 : index
      %81 = vector.load %arg9[%c0_39, %c0_40] : memref<16x32xf32, #tpu.memory_space<vmem>>, vector<16x32xf32>
      %82 = vector.broadcast %80 : vector<16x1xf32> to vector<16x32xf32>
      %83 = arith.mulf %81, %82 : vector<16x32xf32>
      %c0_41 = arith.constant 0 : index
      %c0_42 = arith.constant 0 : index
      %c0_43 = arith.constant 0 : index
      %84 = vector.load %arg6[%c0_41, %c0_42, %c0_43] : memref<1x16x32xf32, #tpu.memory_space<vmem>>, vector<1x16x32xf32>
      %85 = vector.shape_cast %84 : vector<1x16x32xf32> to vector<16x32xf32>
      %86 = vector.shape_cast %83 : vector<16x32xf32> to vector<1x16x32xf32>
      tpu.vector_store %arg6[%c0_41, %c0_42, %c0_43], %86 {strides = array<i32>} : memref<1x16x32xf32, #tpu.memory_space<vmem>>, vector<1x16x32xf32>,
    } else {
    }
    return
  }
  func.func @transform_0(%arg0: i32, %arg1: i32, %arg2: i32, %arg3: memref<1xi32, #tpu.memory_space<smem>>) -> (i32, i32, i32) {
    %c0_i32 = arith.constant 0 : i32
    %c0_i32_0 = arith.constant 0 : i32
    return %arg0, %arg1, %c0_i32 : i32, i32, i32
  }
  func.func @transform_1(%arg0: i32, %arg1: i32, %arg2: i32, %arg3: memref<1xi32, #tpu.memory_space<smem>>) -> (i32, i32, i32) {
    %c0_i32 = arith.constant 0 : i32
    %c0_i32_0 = arith.constant 0 : i32
    return %arg0, %arg2, %c0_i32 : i32, i32, i32
  }
  func.func @transform_2(%arg0: i32, %arg1: i32, %arg2: i32, %arg3: memref<1xi32, #tpu.memory_space<smem>>) -> (i32, i32, i32) {
    %c0_i32 = arith.constant 0 : i32
    %c0_i32_0 = arith.constant 0 : i32
    return %arg0, %arg1, %c0_i32 : i32, i32, i32
  }
}

</mosaic_0001>

<llo_original>
// kernel: attention_dropout.1
$region0: #{attention_dropout.1}
  #allocation0 [shape = 'u32[]', space=smem, size = 0x4, offset = 0x4, fixed_abs, tag = 'smem constant byte address 0x4 - core index']
  #allocation1 [shape = 'u32[144,128]{1,0:T(1,128)}', space=vmem, size = 0x12000, scoped, tag = 'internal scratch']
  #allocation2 [shape = 'f32[16,1]{1,0:T(8,128)}', space=vmem, size = 0x2000, scoped, tag = 'scratch operand']
  #allocation3 [shape = 'f32[16,1]{1,0:T(8,128)}', space=vmem, size = 0x2000, scoped, tag = 'scratch operand']
  #allocation4 [shape = 'f32[16,32]{1,0:T(8,128)}', space=vmem, size = 0x2000, scoped, tag = 'scratch operand']
  #allocation5 [shape = 's32[1]{0}', space=sflag, size = 0x4, scoped, tag = 'scoped memory for attention_dropout.1']
  #allocation6 [shape = 's32[1]{0:T(128)S(6)}', space=smem, size = 0x200, scoped, tag = 'prefetched SMEM operand 0']
  %s0 = inlined_call_operand.<no memory space> [shape: s32[1], index: 0, kind: input, shape index: {}]
  %s1 = inlined_call_operand.hbm [shape: f32[2,16,32], index: 1, kind: input, shape index: {}]
  %s2 = inlined_call_operand.hbm [shape: f32[2,16,32], index: 2, kind: input, shape index: {}]
  %s3 = inlined_call_operand.hbm [shape: f32[2,16,32], index: 3, kind: output, shape index: {}]
  %s4 = sld [smem:[#allocation0]]
  $region57: #{attention_dropout.1} parent=0
    _
  %s6 = ssub.s32 1, %s4
  %s7 = scalar_select 0, %s6, %s4
  %8 = sst [smem:[#allocation6]] %s0
  $region1: #{attention_dropout.1} parent=0
    #allocation7 [shape = 'u8[16384]{0}', space=vmem, size = 0x4000, scoped, tag = 'input window, operand 1']
    #allocation8 [shape = 's32[2]{0}', space=sflag, size = 0x8, scoped, tag = 'scoped memory for attention_dropout.1']
    #allocation9 [shape = 's32[2]{0}', space=sflag, size = 0x8, scoped, tag = 'scoped memory for attention_dropout.1']
    #allocation10 [shape = 'u8[16384]{0}', space=vmem, size = 0x4000, scoped, tag = 'input window, operand 2']
    #allocation11 [shape = 's32[2]{0}', space=sflag, size = 0x8, scoped, tag = 'scoped memory for attention_dropout.1']
    #allocation12 [shape = 'u8[16384]{0}', space=vmem, size = 0x4000, scoped, tag = 'output window, operand 0']
    %9 = vsyncpa [#allocation8], 0
    %s10 = scalar_lea.sflag [#allocation8], 1
    %11 = vsyncpa %s10, 0
    %12 = vsyncpa [#allocation11], 0
    %s13 = scalar_lea.sflag [#allocation11], 1
    %14 = vsyncpa %s13, 0
    %15 = vsyncpa [#allocation9], 0
    %s16 = scalar_lea.sflag [#allocation9], 1
    %17 = vsyncpa %s16, 0
    loop: start=0, step=1, limit=4
    $region2: #{attention_dropout.1} parent=1 // loop_pre_header
      _
    $region3: #{attention_dropout.1} parent=1 // loop_header
      %s19 = sphi 0, %s23
      %p20 = scmp.ge.s32.totalorder %s19, 4
      %s26 = sphi 0, %s45
      %s27 = sphi 0, %s41
      %s28 = sphi 0, %s37
      %s29 = sphi 0, %s26
      %s30 = sphi 0, %s27
      %s31 = sphi 0, %s28
      %s32 = sphi 0, %s29
      %s33 = sphi 0, %s30
      %s34 = sphi 0, %s31
      %s50 = sphi 0, %s52
      %s53 = sphi 0, %s50
      %s54 = sphi 0, %s53
      %s70 = sphi 0, %s54
      %s78 = sphi 0, %s80
      %s81 = sphi 0, %s78
      %s82 = sphi 0, %s81
      %s98 = sphi 0, %s82
      %s106 = sphi 0, %s108
      %s109 = sphi 0, %s106
      %s110 = sphi 0, %s109
      %s126 = sphi 0, %s110
    $region4: #{attention_dropout.1} parent=1 // loop_header_branch
      %22 = sbr.rel (%p20) target = $region8
    $region5: #{attention_dropout.1} parent=1 // loop_body
      %s24 = ssub.s32 %s19, 1
      %s25 = ssub.s32 %s19, 2
      %s35 = sadd.s32 1, %s28
      %p36 = scmp.ge.s32.totalorder %s35, 1
      %s37 = scalar_select %p36, 0, %s35
      %s38 = sadd.s32 1, %s27
      %s39 = scalar_select %p36, %s38, %s27
      %p40 = scmp.ge.s32.totalorder %s39, 1
      %s41 = scalar_select %p40, 0, %s39
      %s42 = sadd.s32 1, %s26
      %s43 = scalar_select %p40, %s42, %s26
      %p44 = scmp.ge.s32.totalorder %s43, 2
      %s45 = scalar_select %p44, 0, %s43
      %s46 = ssub.s32 %s26, %s45
      %s47 = ssub.s32 %s27, %s41
      %s48 = sor.u32 %s46, %s47
      %p49 = scmp.eq.s32.totalorder %s48, 0
      %s51 = sadd.s32 %s50, 1
      %s52 = scalar_select %p49, %s50, %s51
      %p55 = pneg %p49
      %p56 = scmp.eq.s32.totalorder %s19, 1
      %p57 = por %p55, %p56
      %p58 = scmp.ne.s32.totalorder %s50, %s53
      %p59 = scmp.eq.s32.totalorder %s19, 0
      %p60 = por %p58, %p59
      %p61 = scmp.ne.s32.totalorder %s50, %s53
      %p62 = scmp.eq.s32.totalorder %s24, 1
      %p63 = por %p61, %p62
      %p64 = scmp.ne.s32.totalorder %s53, %s54
      %p65 = scmp.eq.s32.totalorder %s24, 0
      %p66 = por %p64, %p65
      %p67 = scmp.ne.s32.totalorder %s53, %s54
      %p68 = scmp.eq.s32.totalorder %s25, 1
      %p69 = por %p67, %p68
      %p71 = scmp.ne.s32.totalorder %s54, %s70
      %p72 = scmp.eq.s32.totalorder %s25, 0
      %p73 = por %p71, %p72
      %s74 = ssub.s32 %s26, %s45
      %s75 = ssub.s32 %s28, %s37
      %s76 = sor.u32 %s74, %s75
      %p77 = scmp.eq.s32.totalorder %s76, 0
      %s79 = sadd.s32 %s78, 1
      %s80 = scalar_select %p77, %s78, %s79
      %p83 = pneg %p77
      %p84 = scmp.eq.s32.totalorder %s19, 1
      %p85 = por %p83, %p84
      %p86 = scmp.ne.s32.totalorder %s78, %s81
      %p87 = scmp.eq.s32.totalorder %s19, 0
      %p88 = por %p86, %p87
      %p89 = scmp.ne.s32.totalorder %s78, %s81
      %p90 = scmp.eq.s32.totalorder %s24, 1
      %p91 = por %p89, %p90
      %p92 = scmp.ne.s32.totalorder %s81, %s82
      %p93 = scmp.eq.s32.totalorder %s24, 0
      %p94 = por %p92, %p93
      %p95 = scmp.ne.s32.totalorder %s81, %s82
      %p96 = scmp.eq.s32.totalorder %s25, 1
      %p97 = por %p95, %p96
      %p99 = scmp.ne.s32.totalorder %s82, %s98
      %p100 = scmp.eq.s32.totalorder %s25, 0
      %p101 = por %p99, %p100
      %s102 = ssub.s32 %s26, %s45
      %s103 = ssub.s32 %s27, %s41
      %s104 = sor.u32 %s102, %s103
      %p105 = scmp.eq.s32.totalorder %s104, 0
      %s107 = sadd.s32 %s106, 1
      %s108 = scalar_select %p105, %s106, %s107
      %p111 = pneg %p105
      %p112 = scmp.eq.s32.totalorder %s19, 1
      %p113 = por %p111, %p112
      %p114 = scmp.ne.s32.totalorder %s106, %s109
      %p115 = scmp.eq.s32.totalorder %s19, 0
      %p116 = por %p114, %p115
      %p117 = scmp.ne.s32.totalorder %s106, %s109
      %p118 = scmp.eq.s32.totalorder %s24, 1
      %p119 = por %p117, %p118
      %p120 = scmp.ne.s32.totalorder %s109, %s110
      %p121 = scmp.eq.s32.totalorder %s24, 0
      %p122 = por %p120, %p121
      %p123 = scmp.ne.s32.totalorder %s109, %s110
      %p124 = scmp.eq.s32.totalorder %s25, 1
      %p125 = por %p123, %p124
      %p127 = scmp.ne.s32.totalorder %s110, %s126
      %p128 = scmp.eq.s32.totalorder %s25, 0
      %p129 = por %p127, %p128
      %p130 = scmp.le.s32.totalorder 1, %s19
      %p131 = scmp.lt.s32.totalorder %s19, 3
      %p132 = pnand %p130, %p131
      %p133 = pneg %p132
      // Predicated region
      $region9: #{attention_dropout.1} parent=5 // pred_check
        _
      $region10: #{attention_dropout.1} parent=5 // pred_check_branch
        %135 = sbr.rel (%p132) target = $region12
      $region11: #{attention_dropout.1} parent=5 // pred_region
        %s136 = ssub.s32 %s19, 1
      $region12: #{attention_dropout.1} parent=5 // pred_fallthru
        _
      %p137 = scmp.lt.s32.totalorder %s19, 2
      // Predicated region
      $region13: #{attention_dropout.1} parent=5 // pred_check
        %p138 = pneg %p137
      $region14: #{attention_dropout.1} parent=5 // pred_check_branch
        %140 = sbr.rel (%p138) target = $region16
      $region15: #{attention_dropout.1} parent=5 // pred_region
        // Predicated region
        $region17: #{attention_dropout.1} parent=15 // pred_check
          %p141 = pneg %p60
        $region18: #{attention_dropout.1} parent=15 // pred_check_branch
          %143 = sbr.rel (%p141) target = $region20
        $region19: #{attention_dropout.1} parent=15 // pred_region
          %s144 = sand.u32 %s50, 1
          %s145 = scalar_lea.sflag [#allocation8], %s144
          %s146 = sand.u32 %s50, 1
          %s147 = smul.addr %s146, 16
          %s148 = scalar_lea.vmem [#allocation7], %s147
          %s149 = smul.u32 2, %s27
          %s151 = ssub.s32 256, 256
          %152 = vsyncadd %s145, %s151
          %s153 = smul.addr %s26, 2
          %s154 = sadd.s32 %s149, %s153
          %s155 = smul.addr %s154, 128
          %s156 = scalar_lea.hbm %s1, %s155
          %s157 = sshll.u32 %s148, 4
          %s158 = int_to_ptr.vmem [resolvable:$true] %s157
          %163 = dma.hbm_to_vmem [thread:$0]  %s156, 256, %s158, %s145, 128, 128, 8
        $region20: #{attention_dropout.1} parent=15 // pred_fallthru
          _
        // Predicated region
        $region21: #{attention_dropout.1} parent=15 // pred_check
          %p164 = pneg %p88
        $region22: #{attention_dropout.1} parent=15 // pred_check_branch
          %166 = sbr.rel (%p164) target = $region24
        $region23: #{attention_dropout.1} parent=15 // pred_region
          %s167 = sand.u32 %s78, 1
          %s168 = scalar_lea.sflag [#allocation11], %s167
          %s169 = sand.u32 %s78, 1
          %s170 = smul.addr %s169, 16
          %s171 = scalar_lea.vmem [#allocation10], %s170
          %s172 = smul.u32 2, %s28
          %s174 = ssub.s32 256, 256
          %175 = vsyncadd %s168, %s174
          %s176 = smul.addr %s26, 2
          %s177 = sadd.s32 %s172, %s176
          %s178 = smul.addr %s177, 128
          %s179 = scalar_lea.hbm %s2, %s178
          %s180 = sshll.u32 %s171, 4
          %s181 = int_to_ptr.vmem [resolvable:$true] %s180
          %186 = dma.hbm_to_vmem [thread:$0]  %s179, 256, %s181, %s168, 128, 128, 8
        $region24: #{attention_dropout.1} parent=15 // pred_fallthru
          _
      $region16: #{attention_dropout.1} parent=5 // pred_fallthru
        _
      %p187 = scmp.le.s32.totalorder 1, %s19
      %p188 = scmp.lt.s32.totalorder %s19, 3
      %p189 = pnand %p187, %p188
      %p190 = pneg %p189
      // Predicated region
      $region25: #{attention_dropout.1} parent=5 // pred_check
        _
      $region26: #{attention_dropout.1} parent=5 // pred_check_branch
        %192 = sbr.rel (%p189) target = $region28
      $region27: #{attention_dropout.1} parent=5 // pred_region
        %s193 = ssub.s32 %s19, 1
        %s194 = sand.u32 %s53, 1
        %s195 = scalar_lea.sflag [#allocation8], %s194
        %s196 = sand.u32 %s53, 1
        %s197 = smul.addr %s196, 16
        %s198 = scalar_lea.vmem [#allocation7], %s197
        // Predicated region
        $region29: #{attention_dropout.1} parent=27 // pred_check
          %p199 = pneg %p66
        $region30: #{attention_dropout.1} parent=27 // pred_check_branch
          %201 = sbr.rel (%p199) target = $region32
        $region31: #{attention_dropout.1} parent=27 // pred_region
          %202 = dma.done %s195, 256
        $region32: #{attention_dropout.1} parent=27 // pred_fallthru
          _
        %s203 = sand.u32 %s81, 1
        %s204 = scalar_lea.sflag [#allocation11], %s203
        %s205 = sand.u32 %s81, 1
        %s206 = smul.addr %s205, 16
        %s207 = scalar_lea.vmem [#allocation10], %s206
        // Predicated region
        $region33: #{attention_dropout.1} parent=27 // pred_check
          %p208 = pneg %p94
        $region34: #{attention_dropout.1} parent=27 // pred_check_branch
          %210 = sbr.rel (%p208) target = $region36
        $region35: #{attention_dropout.1} parent=27 // pred_region
          %211 = dma.done %s204, 256
        $region36: #{attention_dropout.1} parent=27 // pred_fallthru
          _
        %s212 = sand.u32 %s53, 1
        %s213 = scalar_lea.sflag [#allocation8], %s212
        %s214 = sand.u32 %s53, 1
        %s215 = smul.addr %s214, 16
        %s216 = scalar_lea.vmem [#allocation7], %s215
        %p217 = pneg %p66
        %p218 = pneg %p63
        %s219 = sand.u32 %s81, 1
        %s220 = scalar_lea.sflag [#allocation11], %s219
        %s221 = sand.u32 %s81, 1
        %s222 = smul.addr %s221, 16
        %s223 = scalar_lea.vmem [#allocation10], %s222
        %p224 = pneg %p94
        %p225 = pneg %p91
        %p226 = pneg %p122
        %p227 = pneg %p119
        %s228 = sand.u32 %s109, 1
        %s229 = scalar_lea.sflag [#allocation9], %s228
        %s230 = sand.u32 %s109, 1
        %s231 = smul.addr %s230, 16
        %s232 = scalar_lea.vmem [#allocation12], %s231
        %s233 = smul.u32 2, %s30
        %s234 = smul.u32 2, %s31
        %s235 = smul.u32 2, %s30
        %p236 = scmp.eq.s32.totalorder %s31, 0
        // Predicated region
        $region37: #{attention_dropout.1} parent=27 // pred_check
          %p237 = pneg %p236
        $region38: #{attention_dropout.1} parent=27 // pred_check_branch
          %239 = sbr.rel (%p237) target = $region40
        $region39: #{attention_dropout.1} parent=27 // pred_region
          %vm240 = vcmask 7168
          %241 = vst.msk [vmem:[#allocation2] sm:$0xff] %vm240, -inf
          %242 = vst.msk [vmem:[#allocation2 + $0x8] sm:$0xff] %vm240, -inf
          %243 = vst.msk [vmem:[#allocation3] sm:$0xff] %vm240, 0.0
          %244 = vst.msk [vmem:[#allocation3 + $0x8] sm:$0xff] %vm240, 0.0
          %vm245 = vcmask 261120
          %246 = vst.msk [vmem:[#allocation4] sm:$0xff] %vm245, 0.0
          %247 = vst.msk [vmem:[#allocation4 + $0x8] sm:$0xff] %vm245, 0.0
        $region40: #{attention_dropout.1} parent=27 // pred_fallthru
          _
        %v248 = vld [vmem:[%s198] sm:$0xff]
        %v249 = vld [vmem:[%s198 + $0x8] sm:$0xff]
        %v250 = vmul.f32 %v248, 0.044194173
        %v251 = vmul.f32 %v249, 0.044194173
        %v252 = vld [vmem:[%s207] sm:$0xff]
        %v253 = vld [vmem:[%s207 + $0x8] sm:$0xff]
        %vm254 = vcmask 261120
        %v256 = vsel %vm254, %v250, 0
        %v259 = vsel %vm254, %v251, 0
        %v262 = vsel %vm254, %v252, 0
        %v265 = vsel %vm254, %v253, 0
        %267 = vmatprep.subr.mxu0 0.0
        %268 = vmatpush1.xpose.msra.mxu0 %v262
        %269 = vmatprep.subr.mxu0 0.0
        %270 = vmatpush1.xpose.msra.mxu0 %v265
        %271 = vmatprep.subr.mxu0 0.0
        %272 = vmatpush1.xpose.msra.mxu0 0.0
        %273 = vmatprep.subr.mxu0 0.0
        %274 = vmatpush1.xpose.msra.mxu0 0.0
        %275 = vmatprep.subr.mxu0 0.0
        %276 = vmatpush1.xpose.msra.mxu0 0.0
        %277 = vmatprep.subr.mxu0 0.0
        %278 = vmatpush1.xpose.msra.mxu0 0.0
        %279 = vmatprep.subr.mxu0 0.0
        %280 = vmatpush1.xpose.msra.mxu0 0.0
        %281 = vmatprep.subr.mxu0 0.0
        %282 = vmatpush1.xpose.msra.mxu0 0.0
        %283 = vmatprep.subr.mxu0 0.0
        %284 = vmatpush1.xpose.msra.mxu0 0.0
        %285 = vmatprep.subr.mxu0 0.0
        %286 = vmatpush1.xpose.msra.mxu0 0.0
        %287 = vmatprep.subr.mxu0 0.0
        %288 = vmatpush1.xpose.msra.mxu0 0.0
        %289 = vmatprep.subr.mxu0 0.0
        %290 = vmatpush1.xpose.msra.mxu0 0.0
        %291 = vmatprep.subr.mxu0 0.0
        %292 = vmatpush1.xpose.msra.mxu0 0.0
        %293 = vmatprep.subr.mxu0 0.0
        %294 = vmatpush1.xpose.msra.mxu0 0.0
        %295 = vmatprep.subr.mxu0 0.0
        %296 = vmatpush1.xpose.msra.mxu0 0.0
        %297 = vmatprep.subr.mxu0 0.0
        %298 = vmatpush1.xpose.msra.mxu0 0.0
        %299 = vmatprep.subr.mxu0 0.0
        %300 = vmatpush1.xpose.msra.mxu0 0.0
        %301 = vmatprep.subr.mxu0 0.0
        %302 = vmatpush1.xpose.msra.mxu0 0.0
        %303 = vmatprep.subr.mxu0 0.0
        %304 = vmatpush1.xpose.msra.mxu0 0.0
        %305 = vmatprep.subr.mxu0 0.0
        %306 = vmatpush1.xpose.msra.mxu0 0.0
        %307 = vmatprep.subr.mxu0 0.0
        %308 = vmatpush1.xpose.msra.mxu0 0.0
        %309 = vmatprep.subr.mxu0 0.0
        %310 = vmatpush1.xpose.msra.mxu0 0.0
        %311 = vmatprep.subr.mxu0 0.0
        %312 = vmatpush1.xpose.msra.mxu0 0.0
        %313 = vmatprep.subr.mxu0 0.0
        %314 = vmatpush1.xpose.msra.mxu0 0.0
        %315 = vmatprep.subr.mxu0 0.0
        %316 = vmatpush1.xpose.msra.mxu0 0.0
        %317 = vmatprep.subr.mxu0 0.0
        %318 = vmatpush1.xpose.msra.mxu0 0.0
        %319 = vmatprep.subr.mxu0 0.0
        %320 = vmatpush1.xpose.msra.mxu0 0.0
        %321 = vmatprep.subr.mxu0 0.0
        %322 = vmatpush1.xpose.msra.mxu0 0.0
        %323 = vmatprep.subr.mxu0 0.0
        %324 = vmatpush1.xpose.msra.mxu0 0.0
        %325 = vmatprep.subr.mxu0 0.0
        %326 = vmatpush1.xpose.msra.mxu0 0.0
        %327 = vmatprep.subr.mxu0 0.0
        %328 = vmatpush1.xpose.msra.mxu0 0.0
        %329 = vmatprep.subr.mxu0 0.0
        %330 = vmatpush1.xpose.msra.mxu0 0.0
        %331 = vmatprep.mubr.f32.mxu0 0.0
        %332 = vmatmul.mubr.f32.gmra.mrb[0].mxu0 %v256
        %v333 = vpop.f32.mrb[0].mxu0
        %v334 = vadd.f32 0.0, %v333
        %v335 = vpop.f32.mrb[0].mxu0
        %336 = vmatprep.mubr.f32.mxu0 0.0
        %337 = vmatmul.mubr.f32.gmra.mrb[0].mxu0 %v259
        %v338 = vpop.f32.mrb[0].mxu0
        %v339 = vadd.f32 0.0, %v338
        %v340 = vpop.f32.mrb[0].mxu0
        %341 = vdwg.mxu0
        %v342 = vld [vmem:[#allocation2] sm:$0xff]
        %v343 = vld [vmem:[#allocation2 + $0x8] sm:$0xff]
        %vm344 = vcmask 130048
        %v345 = vsel %vm344, %v334, -inf
        %346 = vmax.xlane.f32.xlu0 %v345
        %v347 = vpop.xlane.xlu0 %346
        %v348 = vsel %vm344, %v339, -inf
        %349 = vmax.xlane.f32.xlu0 %v348
        %v350 = vpop.xlane.xlu0 %349
        %v351 = vmax.f32 %v342, %v347
        %v352 = vmax.f32 %v343, %v350
        %v353 = vsub.f32 %v342, %v351
        %v354 = vsub.f32 %v343, %v352
        %v355 = vmul.f32 %v353, 1.442695
        %v356 = vpow.pop %v355
        %v357 = vmul.f32 %v354, 1.442695
        %v358 = vpow.pop %v357
        %360 = vset.pattern.permute.xlu0 0
        %361 = vperm.xlu0 %360, %v351
        %v362 = vpop.permute.xlu0 %361
        %365 = vset.pattern.permute.xlu0 0
        %366 = vperm.xlu0 %365, %v352
        %v367 = vpop.permute.xlu0 %366
        %v369 = vsub.f32 %v334, %v362
        %v370 = vsub.f32 %v339, %v367
        %v371 = vmul.f32 %v369, 1.442695
        %v372 = vpow.pop %v371
        %v373 = vmul.f32 %v370, 1.442695
        %v374 = vpow.pop %v373
        %v375 = vld [vmem:[#allocation3] sm:$0xff]
        %v376 = vld [vmem:[#allocation3 + $0x8] sm:$0xff]
        %v377 = vmul.f32 %v356, %v375
        %v378 = vmul.f32 %v358, %v376
        %v379 = vsel %vm344, %v372, 0.0
        %380 = vadd.xlane.f32.xlu0 %v379
        %v381 = vpop.xlane.xlu0 %380
        %v382 = vsel %vm344, %v374, 0.0
        %383 = vadd.xlane.f32.xlu0 %v382
        %v384 = vpop.xlane.xlu0 %383
        %v385 = vadd.f32 %v377, %v381
        %v386 = vadd.f32 %v378, %v384
        %vm387 = vcmask 7168
        %388 = vst.msk [vmem:[#allocation3] sm:$0xff] %vm387, %v385
        %389 = vst.msk [vmem:[#allocation3 + $0x8] sm:$0xff] %vm387, %v386
        %390 = vst.msk [vmem:[#allocation2] sm:$0xff] %vm387, %v351
        %391 = vst.msk [vmem:[#allocation2 + $0x8] sm:$0xff] %vm387, %v352
        %s392 = smul.u32 %s30, 16
        %v393 = vlaneseq
        %v394 = vshrl.u32 %v393, 7
        %v395 = vadd.s32 %v394, 8
        %v396 = vstv %s392
        %v397 = vadd.s32 %v396, %v394
        %v398 = vadd.s32 %v396, %v395
        %s399 = smul.u32 %s31, 16
        %v400 = vlaneseq
        %v401 = vand.u32 %v400, 127
        %v402 = vstv %s399
        %v403 = vadd.s32 %v402, %v401
        %s404 = smul.u32 %s29, 16
        %v405 = vstv %s404
        %v406 = vadd.s32 %v405, %v397
        %v407 = vadd.s32 %v405, %v398
        %v408 = vmul.u32 %v406, 16
        %v409 = vmul.u32 %v407, 16
        %v410 = vadd.s32 %v408, %v403
        %v411 = vadd.s32 %v409, %v403
        %s412 = sld [smem:[#allocation6]]
        %s413 = sadd.s32 %s412, 2654435769
        %s414 = sshrl.u32 %s413, 16
        %s415 = sxor.u32 %s413, %s414
        %s416 = smul.u32 %s415, 2246822507
        %s417 = sshrl.u32 %s416, 13
        %s418 = sxor.u32 %s416, %s417
        %s419 = smul.u32 %s418, 3266489909
        %s420 = sshrl.u32 %s419, 16
        %s421 = sxor.u32 %s419, %s420
        %v422 = vstv %s421
        %v423 = vxor.u32 %v410, %v422
        %v424 = vxor.u32 %v411, %v422
        %v425 = vshrl.u32 %v423, 16
        %v426 = vshrl.u32 %v424, 16
        %v427 = vxor.u32 %v423, %v425
        %v428 = vxor.u32 %v424, %v426
        %v429 = vmul.u32 %v427, 2246822507
        %v430 = vmul.u32 %v428, 2246822507
        %v431 = vshrl.u32 %v429, 13
        %v432 = vshrl.u32 %v430, 13
        %v433 = vxor.u32 %v429, %v431
        %v434 = vxor.u32 %v430, %v432
        %v435 = vmul.u32 %v433, 3266489909
        %v436 = vmul.u32 %v434, 3266489909
        %v437 = vshrl.u32 %v435, 16
        %v438 = vshrl.u32 %v436, 16
        %v439 = vxor.u32 %v435, %v437
        %v440 = vxor.u32 %v436, %v438
        %vm441 = vcmp.ge.u32.totalorder %v439, 429496730
        %vm442 = vcmp.ge.u32.totalorder %v440, 429496730
        %v443 = vsel %vm441, %v372, 0.0
        %v444 = vsel %vm442, %v374, 0.0
        %v445 = vld [vmem:[#allocation4] sm:$0xff]
        %v446 = vld [vmem:[#allocation4 + $0x8] sm:$0xff]
        %448 = vset.pattern.permute.xlu0 0
        %449 = vperm.xlu0 %448, %v356
        %v450 = vpop.permute.xlu0 %449
        %453 = vset.pattern.permute.xlu0 0
        %454 = vperm.xlu0 %453, %v358
        %v455 = vpop.permute.xlu0 %454
        %v457 = vmul.f32 %v450, %v445
        %v458 = vmul.f32 %v455, %v446
        %v460 = vsel %vm344, %v443, 0
        %v463 = vsel %vm344, %v444, 0
        %465 = vmatprep.subr.mxu0 0.0
        %466 = vmatpush1.msra.mxu0 %v252
        %467 = vmatprep.subr.mxu0 0.0
        %468 = vmatpush1.msra.mxu0 %v253
        %469 = vmatprep.subr.mxu0 0.0
        %470 = vmatpush1.msra.mxu0 0.0
        %471 = vmatprep.subr.mxu0 0.0
        %472 = vmatpush1.msra.mxu0 0.0
        %473 = vmatprep.subr.mxu0 0.0
        %474 = vmatpush1.msra.mxu0 0.0
        %475 = vmatprep.subr.mxu0 0.0
        %476 = vmatpush1.msra.mxu0 0.0
        %477 = vmatprep.subr.mxu0 0.0
        %478 = vmatpush1.msra.mxu0 0.0
        %479 = vmatprep.subr.mxu0 0.0
        %480 = vmatpush1.msra.mxu0 0.0
        %481 = vmatprep.subr.mxu0 0.0
        %482 = vmatpush1.msra.mxu0 0.0
        %483 = vmatprep.subr.mxu0 0.0
        %484 = vmatpush1.msra.mxu0 0.0
        %485 = vmatprep.subr.mxu0 0.0
        %486 = vmatpush1.msra.mxu0 0.0
        %487 = vmatprep.subr.mxu0 0.0
        %488 = vmatpush1.msra.mxu0 0.0
        %489 = vmatprep.subr.mxu0 0.0
        %490 = vmatpush1.msra.mxu0 0.0
        %491 = vmatprep.subr.mxu0 0.0
        %492 = vmatpush1.msra.mxu0 0.0
        %493 = vmatprep.subr.mxu0 0.0
        %494 = vmatpush1.msra.mxu0 0.0
        %495 = vmatprep.subr.mxu0 0.0
        %496 = vmatpush1.msra.mxu0 0.0
        %497 = vmatprep.subr.mxu0 0.0
        %498 = vmatpush1.msra.mxu0 0.0
        %499 = vmatprep.subr.mxu0 0.0
        %500 = vmatpush1.msra.mxu0 0.0
        %501 = vmatprep.subr.mxu0 0.0
        %502 = vmatpush1.msra.mxu0 0.0
        %503 = vmatprep.subr.mxu0 0.0
        %504 = vmatpush1.msra.mxu0 0.0
        %505 = vmatprep.subr.mxu0 0.0
        %506 = vmatpush1.msra.mxu0 0.0
        %507 = vmatprep.subr.mxu0 0.0
        %508 = vmatpush1.msra.mxu0 0.0
        %509 = vmatprep.subr.mxu0 0.0
        %510 = vmatpush1.msra.mxu0 0.0
        %511 = vmatprep.subr.mxu0 0.0
        %512 = vmatpush1.msra.mxu0 0.0
        %513 = vmatprep.subr.mxu0 0.0
        %514 = vmatpush1.msra.mxu0 0.0
        %515 = vmatprep.subr.mxu0 0.0
        %516 = vmatpush1.msra.mxu0 0.0
        %517 = vmatprep.subr.mxu0 0.0
        %518 = vmatpush1.msra.mxu0 0.0
        %519 = vmatprep.subr.mxu0 0.0
        %520 = vmatpush1.msra.mxu0 0.0
        %521 = vmatprep.subr.mxu0 0.0
        %522 = vmatpush1.msra.mxu0 0.0
        %523 = vmatprep.subr.mxu0 0.0
        %524 = vmatpush1.msra.mxu0 0.0
        %525 = vmatprep.subr.mxu0 0.0
        %526 = vmatpush1.msra.mxu0 0.0
        %527 = vmatprep.subr.mxu0 0.0
        %528 = vmatpush1.msra.mxu0 0.0
        %529 = vmatprep.mubr.f32.mxu0 0.0
        %530 = vmatmul.mubr.f32.gmra.mrb[0].mxu0 %v460
        %v531 = vpop.f32.mrb[0].mxu0
        %v532 = vadd.f32 0.0, %v531
        %v533 = vpop.f32.mrb[0].mxu0
        %534 = vmatprep.mubr.f32.mxu0 0.0
        %535 = vmatmul.mubr.f32.gmra.mrb[0].mxu0 %v463
        %v536 = vpop.f32.mrb[0].mxu0
        %v537 = vadd.f32 0.0, %v536
        %v538 = vpop.f32.mrb[0].mxu0
        %539 = vdwg.mxu0
        %v540 = vadd.f32 %v457, %v532
        %v541 = vadd.f32 %v458, %v537
        %542 = vst.msk [vmem:[#allocation4] sm:$0xff] %vm254, %v540
        %543 = vst.msk [vmem:[#allocation4 + $0x8] sm:$0xff] %vm254, %v541
        // Predicated region
        $region41: #{attention_dropout.1} parent=27 // pred_check
          %p544 = pneg %p236
        $region42: #{attention_dropout.1} parent=27 // pred_check_branch
          %546 = sbr.rel (%p544) target = $region44
        $region43: #{attention_dropout.1} parent=27 // pred_region
          %v547 = vld [vmem:[#allocation3] sm:$0xff]
          %v548 = vld [vmem:[#allocation3 + $0x8] sm:$0xff]
          %v549 = vrcp.pop %v547
          %v550 = vmul.f32 1.1111112, %v549
          %v551 = vrcp.pop %v548
          %v552 = vmul.f32 1.1111112, %v551
          %v553 = vld [vmem:[#allocation4] sm:$0xff]
          %v554 = vld [vmem:[#allocation4 + $0x8] sm:$0xff]
          %556 = vset.pattern.permute.xlu0 0
          %557 = vperm.xlu0 %556, %v550
          %v558 = vpop.permute.xlu0 %557
          %561 = vset.pattern.permute.xlu0 0
          %562 = vperm.xlu0 %561, %v552
          %v563 = vpop.permute.xlu0 %562
          %v565 = vmul.f32 %v553, %v558
          %v566 = vmul.f32 %v554, %v563
          %567 = vst.msk [vmem:[%s232] sm:$0xff] %vm254, %v565
          %568 = vst.msk [vmem:[%s232 + $0x8] sm:$0xff] %vm254, %v566
        $region44: #{attention_dropout.1} parent=27 // pred_fallthru
          _
        %s569 = sand.u32 %s109, 1
        %s570 = scalar_lea.sflag [#allocation9], %s569
        %s571 = sand.u32 %s109, 1
        %s572 = smul.addr %s571, 16
        %s573 = scalar_lea.vmem [#allocation12], %s572
        // Predicated region
        $region45: #{attention_dropout.1} parent=27 // pred_check
          %p574 = pneg %p119
        $region46: #{attention_dropout.1} parent=27 // pred_check_branch
          %576 = sbr.rel (%p574) target = $region48
        $region47: #{attention_dropout.1} parent=27 // pred_region
          %s577 = smul.u32 2, %s30
          %s579 = ssub.s32 256, 256
          %580 = vsyncadd %s570, %s579
          %s581 = smul.addr %s29, 2
          %s582 = sadd.s32 %s577, %s581
          %s583 = smul.addr %s582, 128
          %s584 = scalar_lea.hbm %s3, %s583
          %s585 = sshll.u32 %s573, 4
          %s586 = int_to_ptr.vmem [resolvable:$true] %s585
          %591 = dma.vmem_to_hbm [thread:$0]  %s586, 256, %s584, %s570, 128, 128, 8
        $region48: #{attention_dropout.1} parent=27 // pred_fallthru
          _
      $region28: #{attention_dropout.1} parent=5 // pred_fallthru
        _
      %p592 = scmp.le.s32.totalorder 2, %s19
      // Predicated region
      $region49: #{attention_dropout.1} parent=5 // pred_check
        %p593 = pneg %p592
      $region50: #{attention_dropout.1} parent=5 // pred_check_branch
        %595 = sbr.rel (%p593) target = $region52
      $region51: #{attention_dropout.1} parent=5 // pred_region
        %s596 = ssub.s32 %s19, 2
        // Predicated region
        $region53: #{attention_dropout.1} parent=51 // pred_check
          %p597 = pneg %p125
        $region54: #{attention_dropout.1} parent=51 // pred_check_branch
          %599 = sbr.rel (%p597) target = $region56
        $region55: #{attention_dropout.1} parent=51 // pred_region
          %s600 = sand.u32 %s110, 1
          %s601 = scalar_lea.sflag [#allocation9], %s600
          %s602 = sand.u32 %s110, 1
          %s603 = smul.addr %s602, 16
          %s604 = scalar_lea.vmem [#allocation12], %s603
          %605 = dma.done %s601, 256
        $region56: #{attention_dropout.1} parent=51 // pred_fallthru
          _
      $region52: #{attention_dropout.1} parent=5 // pred_fallthru
        _
    $region6: #{attention_dropout.1} parent=1 // loop_footer
      %s23 = sadd.s32 1, %s19
    $region7: #{attention_dropout.1} parent=1 // loop_footer_branch
      %18 = sbr.rel target = $region3
    $region8: #{attention_dropout.1} parent=1 // loop_exit
      _
    %606 = vsyncpa [#allocation8], 1
    %s607 = scalar_lea.sflag [#allocation8], 1
    %608 = vsyncpa %s607, 1
    %609 = vsyncpa [#allocation11], 1
    %s610 = scalar_lea.sflag [#allocation11], 1
    %611 = vsyncpa %s610, 1
    %612 = vsyncpa [#allocation9], 1
    %s613 = scalar_lea.sflag [#allocation9], 1
    %614 = vsyncpa %s613, 1

</llo_original>
